<compile_context>
chip_gen: v5e
topology: v5e:2x2
jax: 0.10.0
libtpu: 0.0.40
codegen_flags: <defaults>
</compile_context>

<pallas_src>
import functools

import jax
import jax.numpy as jnp
from jax.experimental import pallas as pl
from jax.experimental.pallas import tpu as pltpu


def _round_up(x: int, m: int) -> int:
    return (x + m - 1) // m * m


# ---------------------------------------------------------------------------
# Kernel
# ---------------------------------------------------------------------------
def actor_critic_kernel(
    x_ref,                       # [TILE_B, S_PAD]   bf16
    w1_ref, b1_ref,              # shared layer 1: [S_PAD, H_PAD] bf16, [1, H_PAD] f32
    w2_ref, b2_ref,              # shared layer 2: [H_PAD, H_PAD] bf16, [1, H_PAD] f32
    hw1_ref, hb1_ref,            # fused head layer 1: [H_PAD, 2*H_PAD] bf16, [1, 2*H_PAD] f32
    hw2_ref, hb2_ref,            # fused block-diag head layer 2: [2*H_PAD, OUT_PAD] bf16, [1, OUT_PAD] f32
    out_ref,                     # [TILE_B, OUT_PAD] f32  (lanes [0,A)=probs, lane A=value)
    *,
    action_dim: int,
):
    x = x_ref[...]

    # shared_layers: Linear -> ReLU -> Linear -> ReLU   (f32 accumulation)
    h = jnp.dot(x, w1_ref[...], preferred_element_type=jnp.float32) + b1_ref[...]
    h = jnp.maximum(h, 0.0).astype(jnp.bfloat16)
    h = jnp.dot(h, w2_ref[...], preferred_element_type=jnp.float32) + b2_ref[...]
    h = jnp.maximum(h, 0.0).astype(jnp.bfloat16)

    # fused actor/critic first layers: one [H_PAD, 2*H_PAD] matmul
    g = jnp.dot(h, hw1_ref[...], preferred_element_type=jnp.float32) + hb1_ref[...]
    g = jnp.maximum(g, 0.0).astype(jnp.bfloat16)

    # fused block-diagonal second layers: lanes [0, A) = actor logits, lane A = value
    z = jnp.dot(g, hw2_ref[...], preferred_element_type=jnp.float32) + hb2_ref[...]

    # softmax over the real action lanes only (mask padding + value lane)
    col = jax.lax.broadcasted_iota(jnp.int32, z.shape, 1)
    is_logit = col < action_dim
    logits = jnp.where(is_logit, z, -1e30)
    m = jnp.max(logits, axis=-1, keepdims=True)
    e = jnp.exp(logits - m)
    denom = jnp.sum(e, axis=-1, keepdims=True)
    inv = pl.reciprocal(denom, approx=True)         # EUP vrcp (free slot)
    inv = inv * (2.0 - denom * inv)                 # one Newton step -> ~f32 accuracy
    probs = e * inv

    # lane-dense write: probs in logit lanes, raw z elsewhere (value lane survives)
    out_ref[...] = jnp.where(is_logit, probs, z).astype(out_ref.dtype)


# ---------------------------------------------------------------------------
# Wrapper
# ---------------------------------------------------------------------------
def actor_critic_forward(state, packed, action_dim, *, max_tile_b: int = 512):
    """state: [B, state_dim] f32.  packed: output of pack_params()."""
    B, state_dim = state.shape
    S_PAD, H_PAD = packed["w1"].shape
    OUT_PAD = packed["hw2"].shape[1]

    TILE_B = min(max_tile_b, _round_up(B, 8))
    B_pad = _round_up(B, TILE_B)

    # pad state to (B_pad, S_PAD), cast matmul operand to bf16
    x = jnp.zeros((B_pad, S_PAD), jnp.bfloat16)
    x = x.at[:B, :state_dim].set(state.astype(jnp.bfloat16))

    # VMEM budget: double-buffered tiles + resident weights, with headroom
    weight_bytes = (
        S_PAD * H_PAD + H_PAD * H_PAD + H_PAD * 2 * H_PAD + 2 * H_PAD * OUT_PAD
    ) * 2  # bf16
    bias_bytes = (H_PAD + H_PAD + 2 * H_PAD + OUT_PAD) * 4
    tile_bytes = TILE_B * (S_PAD * 2 + OUT_PAD * 4)
    vmem_limit = min(2 * (weight_bytes + bias_bytes + tile_bytes) + (8 << 20), 48 << 20)

    kernel = functools.partial(actor_critic_kernel, action_dim=action_dim)
    const = lambda i: (0, 0)   # weights/biases: same block every grid step (resident)

    out = pl.pallas_call(
        kernel,
        out_shape=jax.ShapeDtypeStruct((B_pad, OUT_PAD), jnp.float32),
        grid=(B_pad // TILE_B,),
        in_specs=[
            pl.BlockSpec((TILE_B, S_PAD), lambda i: (i, 0)),       # state tile
            pl.BlockSpec((S_PAD, H_PAD), const),                   # w1
            pl.BlockSpec((1, H_PAD), const),                       # b1
            pl.BlockSpec((H_PAD, H_PAD), const),                   # w2
            pl.BlockSpec((1, H_PAD), const),                       # b2
            pl.BlockSpec((H_PAD, 2 * H_PAD), const),               # fused head w1
            pl.BlockSpec((1, 2 * H_PAD), const),                   # fused head b1
            pl.BlockSpec((2 * H_PAD, OUT_PAD), const),             # fused head w2
            pl.BlockSpec((1, OUT_PAD), const),                     # fused head b2
        ],
        out_specs=pl.BlockSpec((TILE_B, OUT_PAD), lambda i: (i, 0)),
        compiler_params=pltpu.CompilerParams(
            dimension_semantics=("parallel",),
            vmem_limit_bytes=int(vmem_limit),
        ),
    )(
        x,
        packed["w1"], packed["b1"], packed["w2"], packed["b2"],
        packed["hw1"], packed["hb1"], packed["hw2"], packed["hb2"],
    )

    probs = out[:B, :action_dim]
    value = out[:B, action_dim:action_dim + 1]
    return probs, value


# ---------------------------------------------------------------------------
# Parameters
# ---------------------------------------------------------------------------
def init_params(key, state_dim, action_dim, hidden_dim):
    """PyTorch nn.Linear default init: U(-1/sqrt(fan_in), +1/sqrt(fan_in)).
    Weights stored [in, out]; biases [1, out]; all f32."""
    def linear(k, fan_in, fan_out):
        kw, kb = jax.random.split(k)
        bound = 1.0 / jnp.sqrt(jnp.float32(fan_in))
        w = jax.random.uniform(kw, (fan_in, fan_out), jnp.float32, -bound, bound)
        b = jax.random.uniform(kb, (1, fan_out), jnp.float32, -bound, bound)
        return w, b

    keys = jax.random.split(key, 6)
    p = {}
    p["w1"], p["b1"] = linear(keys[0], state_dim, hidden_dim)
    p["w2"], p["b2"] = linear(keys[1], hidden_dim, hidden_dim)
    p["aw1"], p["ab1"] = linear(keys[2], hidden_dim, hidden_dim)
    p["aw2"], p["ab2"] = linear(keys[3], hidden_dim, action_dim)
    p["cw1"], p["cb1"] = linear(keys[4], hidden_dim, hidden_dim)
    p["cw2"], p["cb2"] = linear(keys[5], hidden_dim, 1)
    return p


def pack_params(params, state_dim, action_dim, hidden_dim):
    """Pad to 128-lane tiles, fuse actor/critic head layers, cast weights to bf16."""
    S_PAD = _round_up(state_dim, 128)
    H_PAD = _round_up(hidden_dim, 128)
    OUT_PAD = _round_up(action_dim + 1, 128)

    def pad2(a, shape):
        out = jnp.zeros(shape, jnp.float32)
        return out.at[: a.shape[0], : a.shape[1]].set(a)

    w1 = pad2(params["w1"], (S_PAD, H_PAD))
    b1 = pad2(params["b1"], (1, H_PAD))
    w2 = pad2(params["w2"], (H_PAD, H_PAD))
    b2 = pad2(params["b2"], (1, H_PAD))

    # fused head first layer: cols [0, H_PAD) actor, [H_PAD, 2*H_PAD) critic
    hw1 = jnp.zeros((H_PAD, 2 * H_PAD), jnp.float32)
    hw1 = hw1.at[:hidden_dim, :hidden_dim].set(params["aw1"])
    hw1 = hw1.at[:hidden_dim, H_PAD:H_PAD + hidden_dim].set(params["cw1"])
    hb1 = jnp.zeros((1, 2 * H_PAD), jnp.float32)
    hb1 = hb1.at[:, :hidden_dim].set(params["ab1"])
    hb1 = hb1.at[:, H_PAD:H_PAD + hidden_dim].set(params["cb1"])

    # fused block-diagonal head second layer: out lanes [0,A)=logits, lane A=value
    hw2 = jnp.zeros((2 * H_PAD, OUT_PAD), jnp.float32)
    hw2 = hw2.at[:hidden_dim, :action_dim].set(params["aw2"])
    hw2 = hw2.at[H_PAD:H_PAD + hidden_dim, action_dim:action_dim + 1].set(params["cw2"])
    hb2 = jnp.zeros((1, OUT_PAD), jnp.float32)
    hb2 = hb2.at[:, :action_dim].set(params["ab2"])
    hb2 = hb2.at[:, action_dim:action_dim + 1].set(params["cb2"])

    return dict(
        w1=w1.astype(jnp.bfloat16), b1=b1,
        w2=w2.astype(jnp.bfloat16), b2=b2,
        hw1=hw1.astype(jnp.bfloat16), hb1=hb1,
        hw2=hw2.astype(jnp.bfloat16), hb2=hb2,
    )


# ---------------------------------------------------------------------------
# References
# ---------------------------------------------------------------------------
def reference_forward(state, params, matmul_dtype=jnp.float32):
    """Plain-JAX reference (PyTorch semantics). matmul_dtype=bf16 mimics the
    kernel's bf16-operand / f32-accumulate matmuls."""
    def mm(x, w):
        return jnp.dot(x.astype(matmul_dtype), w.astype(matmul_dtype),
                       preferred_element_type=jnp.float32)

    h = jnp.maximum(mm(state, params["w1"]) + params["b1"], 0.0)
    h = jnp.maximum(mm(h, params["w2"]) + params["b2"], 0.0)
    a = jnp.maximum(mm(h, params["aw1"]) + params["ab1"], 0.0)
    logits = mm(a, params["aw2"]) + params["ab2"]
    probs = jax.nn.softmax(logits, axis=-1)
    c = jnp.maximum(mm(h, params["cw1"]) + params["cb1"], 0.0)
    value = mm(c, params["cw2"]) + params["cb2"]
    return probs, value


# TODO(synk): `act()` (Categorical sampling / log_prob) is host-side control
# logic around the forward pass and is intentionally not part of this kernel.

if __name__ == "__main__":
    batch = 4
    state_dim = 16
    action_dim = 8
    hidden_dim = 32

    key = jax.random.PRNGKey(0)
    k_params, k_state = jax.random.split(key)
    params = init_params(k_params, state_dim, action_dim, hidden_dim)
    packed = pack_params(params, state_dim, action_dim, hidden_dim)
    state = jax.random.normal(k_state, (batch, state_dim), jnp.float32)

    probs, value = actor_critic_forward(state, packed, action_dim)
    probs = jax.block_until_ready(probs)
    value = jax.block_until_ready(value)

    assert probs.shape == (batch, action_dim)
    assert value.shape == (batch, 1)

    # tight check vs. a bf16-matmul-mimicking reference
    ref_probs_bf16, ref_value_bf16 = reference_forward(state, params, jnp.bfloat16)
    assert jnp.allclose(probs, ref_probs_bf16, atol=2e-3, rtol=2e-3)
    assert jnp.allclose(value, ref_value_bf16, atol=2e-3, rtol=2e-3)

    # loose sanity check vs. the pure-f32 reference
    ref_probs_f32, ref_value_f32 = reference_forward(state, params, jnp.float32)
    assert jnp.allclose(probs, ref_probs_f32, atol=3e-2, rtol=3e-2)
    assert jnp.allclose(value, ref_value_f32, atol=3e-2, rtol=3e-2)

    # probabilities remain normalized despite lane padding + approx reciprocal
    assert jnp.allclose(jnp.sum(probs, axis=-1), 1.0, atol=1e-4)

    print("KERNEL_OK")
</pallas_src>

<mosaic_0001>
module attributes {stable_mosaic.version = 11 : i64} {
  func.func @actor_critic_kernel(%arg0: i32, %arg1: memref<8x128xbf16, #tpu.memory_space<vmem>>, %arg2: memref<128x128xbf16, #tpu.memory_space<vmem>>, %arg3: memref<1x128xf32, #tpu.memory_space<vmem>>, %arg4: memref<128x128xbf16, #tpu.memory_space<vmem>>, %arg5: memref<1x128xf32, #tpu.memory_space<vmem>>, %arg6: memref<128x256xbf16, #tpu.memory_space<vmem>>, %arg7: memref<1x256xf32, #tpu.memory_space<vmem>>, %arg8: memref<256x128xbf16, #tpu.memory_space<vmem>>, %arg9: memref<1x128xf32, #tpu.memory_space<vmem>>, %arg10: memref<8x128xf32, #tpu.memory_space<vmem>>) attributes {dimension_semantics = [#tpu.dimension_semantics<parallel>], iteration_bounds = array<i64: 1>, scalar_prefetch = 0 : i64, scratch_operands = 0 : i64, tpu.core_type = #tpu.core_type<tc>, window_params = [{transform_indices = @transform_0, window_bounds = array<i64: 8, 128>}, {pipeline_mode = #tpu.pipeline_mode<synchronous>, transform_indices = @transform_1, window_bounds = array<i64: 128, 128>}, {pipeline_mode = #tpu.pipeline_mode<synchronous>, transform_indices = @transform_2, window_bounds = array<i64: 1, 128>}, {pipeline_mode = #tpu.pipeline_mode<synchronous>, transform_indices = @transform_3, window_bounds = array<i64: 128, 128>}, {pipeline_mode = #tpu.pipeline_mode<synchronous>, transform_indices = @transform_4, window_bounds = array<i64: 1, 128>}, {pipeline_mode = #tpu.pipeline_mode<synchronous>, transform_indices = @transform_5, window_bounds = array<i64: 128, 256>}, {pipeline_mode = #tpu.pipeline_mode<synchronous>, transform_indices = @transform_6, window_bounds = array<i64: 1, 256>}, {pipeline_mode = #tpu.pipeline_mode<synchronous>, transform_indices = @transform_7, window_bounds = array<i64: 256, 128>}, {pipeline_mode = #tpu.pipeline_mode<synchronous>, transform_indices = @transform_8, window_bounds = array<i64: 1, 128>}, {transform_indices = @transform_9, window_bounds = array<i64: 8, 128>}]} {
    %c0 = arith.constant 0 : index
    %c0_0 = arith.constant 0 : index
    %0 = vector.load %arg1[%c0, %c0_0] : memref<8x128xbf16, #tpu.memory_space<vmem>>, vector<8x128xbf16>
    %c0_1 = arith.constant 0 : index
    %c0_2 = arith.constant 0 : index
    %1 = vector.load %arg2[%c0_1, %c0_2] : memref<128x128xbf16, #tpu.memory_space<vmem>>, vector<128x128xbf16>
    %cst = arith.constant dense<0.000000e+00> : vector<8x128xf32>
    %2 = tpu.matmul %0, %1, %cst {dimension_numbers = #tpu.dot_dimension_numbers<[1], [0], [0], [1], [0, 0, 1, 1], [], []>} : vector<8x128xbf16>, vector<128x128xbf16>, vector<8x128xf32> -> vector<8x128xf32>
    %c0_3 = arith.constant 0 : index
    %c0_4 = arith.constant 0 : index
    %3 = vector.load %arg3[%c0_3, %c0_4] : memref<1x128xf32, #tpu.memory_space<vmem>>, vector<1x128xf32>
    %4 = vector.broadcast %3 : vector<1x128xf32> to vector<8x128xf32>
    %5 = arith.addf %2, %4 : vector<8x128xf32>
    %cst_5 = arith.constant 0.000000e+00 : f32
    %6 = vector.broadcast %cst_5 : f32 to vector<8x128xf32>
    %7 = arith.maximumf %5, %6 : vector<8x128xf32>
    %8 = arith.truncf %7 : vector<8x128xf32> to vector<8x128xbf16>
    %c0_6 = arith.constant 0 : index
    %c0_7 = arith.constant 0 : index
    %9 = vector.load %arg4[%c0_6, %c0_7] : memref<128x128xbf16, #tpu.memory_space<vmem>>, vector<128x128xbf16>
    %cst_8 = arith.constant dense<0.000000e+00> : vector<8x128xf32>
    %10 = tpu.matmul %8, %9, %cst_8 {dimension_numbers = #tpu.dot_dimension_numbers<[1], [0], [0], [1], [0, 0, 1, 1], [], []>} : vector<8x128xbf16>, vector<128x128xbf16>, vector<8x128xf32> -> vector<8x128xf32>
    %c0_9 = arith.constant 0 : index
    %c0_10 = arith.constant 0 : index
    %11 = vector.load %arg5[%c0_9, %c0_10] : memref<1x128xf32, #tpu.memory_space<vmem>>, vector<1x128xf32>
    %12 = vector.broadcast %11 : vector<1x128xf32> to vector<8x128xf32>
    %13 = arith.addf %10, %12 : vector<8x128xf32>
    %cst_11 = arith.constant 0.000000e+00 : f32
    %14 = vector.broadcast %cst_11 : f32 to vector<8x128xf32>
    %15 = arith.maximumf %13, %14 : vector<8x128xf32>
    %16 = arith.truncf %15 : vector<8x128xf32> to vector<8x128xbf16>
    %c0_12 = arith.constant 0 : index
    %c0_13 = arith.constant 0 : index
    %17 = vector.load %arg6[%c0_12, %c0_13] : memref<128x256xbf16, #tpu.memory_space<vmem>>, vector<128x256xbf16>
    %cst_14 = arith.constant dense<0.000000e+00> : vector<8x256xf32>
    %18 = tpu.matmul %16, %17, %cst_14 {dimension_numbers = #tpu.dot_dimension_numbers<[1], [0], [0], [1], [0, 0, 1, 1], [], []>} : vector<8x128xbf16>, vector<128x256xbf16>, vector<8x256xf32> -> vector<8x256xf32>
    %c0_15 = arith.constant 0 : index
    %c0_16 = arith.constant 0 : index
    %19 = vector.load %arg7[%c0_15, %c0_16] : memref<1x256xf32, #tpu.memory_space<vmem>>, vector<1x256xf32>
    %20 = vector.broadcast %19 : vector<1x256xf32> to vector<8x256xf32>
    %21 = arith.addf %18, %20 : vector<8x256xf32>
    %cst_17 = arith.constant 0.000000e+00 : f32
    %22 = vector.broadcast %cst_17 : f32 to vector<8x256xf32>
    %23 = arith.maximumf %21, %22 : vector<8x256xf32>
    %24 = arith.truncf %23 : vector<8x256xf32> to vector<8x256xbf16>
    %c0_18 = arith.constant 0 : index
    %c0_19 = arith.constant 0 : index
    %25 = vector.load %arg8[%c0_18, %c0_19] : memref<256x128xbf16, #tpu.memory_space<vmem>>, vector<256x128xbf16>
    %cst_20 = arith.constant dense<0.000000e+00> : vector<8x128xf32>
    %26 = tpu.matmul %24, %25, %cst_20 {dimension_numbers = #tpu.dot_dimension_numbers<[1], [0], [0], [1], [0, 0, 1, 1], [], []>} : vector<8x256xbf16>, vector<256x128xbf16>, vector<8x128xf32> -> vector<8x128xf32>
    %c0_21 = arith.constant 0 : index
    %c0_22 = arith.constant 0 : index
    %27 = vector.load %arg9[%c0_21, %c0_22] : memref<1x128xf32, #tpu.memory_space<vmem>>, vector<1x128xf32>
    %28 = vector.broadcast %27 : vector<1x128xf32> to vector<8x128xf32>
    %29 = arith.addf %26, %28 : vector<8x128xf32>
    %30 = tpu.iota {dimensions = array<i32: 1>} : vector<8x128xi32>
    %c8_i32 = arith.constant 8 : i32
    %31 = vector.broadcast %c8_i32 : i32 to vector<8x128xi32>
    %32 = arith.cmpi slt, %30, %31 : vector<8x128xi32>
    %cst_23 = arith.constant -1.000000e+30 : f32
    %33 = vector.broadcast %cst_23 : f32 to vector<8x128xf32>
    %34 = arith.select %32, %29, %33 : vector<8x128xi1>, vector<8x128xf32>
    %cst_24 = arith.constant dense<0xFF800000> : vector<8xf32>
    %35 = vector.multi_reduction <maximumf>, %34, %cst_24 [1] : vector<8x128xf32> to vector<8xf32>
    %36 = vector.shape_cast %35 : vector<8xf32> to vector<8x1xf32>
    %37 = vector.broadcast %36 : vector<8x1xf32> to vector<8x128xf32>
    %38 = arith.subf %34, %37 : vector<8x128xf32>
    %39 = math.exp %38 : vector<8x128xf32>
    %cst_25 = arith.constant dense<0.000000e+00> : vector<8xf32>
    %40 = vector.multi_reduction <add>, %39, %cst_25 [1] : vector<8x128xf32> to vector<8xf32>
    %41 = vector.shape_cast %40 : vector<8xf32> to vector<8x1xf32>
    %42 = tpu.reciprocal %41 {approx = true} : vector<8x1xf32> -> vector<8x1xf32>
    %43 = arith.mulf %41, %42 : vector<8x1xf32>
    %cst_26 = arith.constant 2.000000e+00 : f32
    %44 = vector.broadcast %cst_26 : f32 to vector<8x1xf32>
    %45 = arith.subf %44, %43 : vector<8x1xf32>
    %46 = arith.mulf %42, %45 : vector<8x1xf32>
    %47 = vector.broadcast %46 : vector<8x1xf32> to vector<8x128xf32>
    %48 = arith.mulf %39, %47 : vector<8x128xf32>
    %49 = arith.select %32, %48, %29 : vector<8x128xi1>, vector<8x128xf32>
    %c0_27 = arith.constant 0 : index
    %c0_28 = arith.constant 0 : index
    %50 = vector.load %arg10[%c0_27, %c0_28] : memref<8x128xf32, #tpu.memory_space<vmem>>, vector<8x128xf32>
    tpu.vector_store %arg10[%c0_27, %c0_28], %49 {strides = array<i32>} : memref<8x128xf32, #tpu.memory_space<vmem>>, vector<8x128xf32>,
    return
  }
  func.func @transform_0(%arg0: i32) -> (i32, i32) {
    %c0_i32 = arith.constant 0 : i32
    %c0_i32_0 = arith.constant 0 : i32
    return %arg0, %c0_i32 : i32, i32
  }
  func.func @transform_1(%arg0: i32) -> (i32, i32) {
    %c0_i32 = arith.constant 0 : i32
    %c0_i32_0 = arith.constant 0 : i32
    %c0_i32_1 = arith.constant 0 : i32
    return %c0_i32, %c0_i32_0 : i32, i32
  }
  func.func @transform_2(%arg0: i32) -> (i32, i32) {
    %c0_i32 = arith.constant 0 : i32
    %c0_i32_0 = arith.constant 0 : i32
    %c0_i32_1 = arith.constant 0 : i32
    return %c0_i32, %c0_i32_0 : i32, i32
  }
  func.func @transform_3(%arg0: i32) -> (i32, i32) {
    %c0_i32 = arith.constant 0 : i32
    %c0_i32_0 = arith.constant 0 : i32
    %c0_i32_1 = arith.constant 0 : i32
    return %c0_i32, %c0_i32_0 : i32, i32
  }
  func.func @transform_4(%arg0: i32) -> (i32, i32) {
    %c0_i32 = arith.constant 0 : i32
    %c0_i32_0 = arith.constant 0 : i32
    %c0_i32_1 = arith.constant 0 : i32
    return %c0_i32, %c0_i32_0 : i32, i32
  }
  func.func @transform_5(%arg0: i32) -> (i32, i32) {
    %c0_i32 = arith.constant 0 : i32
    %c0_i32_0 = arith.constant 0 : i32
    %c0_i32_1 = arith.constant 0 : i32
    return %c0_i32, %c0_i32_0 : i32, i32
  }
  func.func @transform_6(%arg0: i32) -> (i32, i32) {
    %c0_i32 = arith.constant 0 : i32
    %c0_i32_0 = arith.constant 0 : i32
    %c0_i32_1 = arith.constant 0 : i32
    return %c0_i32, %c0_i32_0 : i32, i32
  }
  func.func @transform_7(%arg0: i32) -> (i32, i32) {
    %c0_i32 = arith.constant 0 : i32
    %c0_i32_0 = arith.constant 0 : i32
    %c0_i32_1 = arith.constant 0 : i32
    return %c0_i32, %c0_i32_0 : i32, i32
  }
  func.func @transform_8(%arg0: i32) -> (i32, i32) {
    %c0_i32 = arith.constant 0 : i32
    %c0_i32_0 = arith.constant 0 : i32
    %c0_i32_1 = arith.constant 0 : i32
    return %c0_i32, %c0_i32_0 : i32, i32
  }
  func.func @transform_9(%arg0: i32) -> (i32, i32) {
    %c0_i32 = arith.constant 0 : i32
    %c0_i32_0 = arith.constant 0 : i32
    return %arg0, %c0_i32 : i32, i32
  }
}

</mosaic_0001>

<llo_original>
// kernel: tpu_custom_call.1
$region0: #{tpu_custom_call.1}
  #allocation0 [shape = 'u32[]', space=smem, size = 0x4, offset = 0x4, fixed_abs, tag = 'smem constant byte address 0x4 - core index']
  #allocation1 [shape = 'u32[72,128]{1,0:T(1,128)}', space=vmem, size = 0x9000, scoped, tag = 'internal scratch']
  %s0 = inlined_call_operand.hbm [shape: bf16[8,128], index: 0, kind: input, shape index: {}]
  %s1 = inlined_call_operand.hbm [shape: bf16[128,128], index: 1, kind: input, shape index: {}]
  %s2 = inlined_call_operand.vmem [shape: f32[1,128], index: 2, kind: input, shape index: {}]
  %s3 = inlined_call_operand.hbm [shape: bf16[128,128], index: 3, kind: input, shape index: {}]
  %s4 = inlined_call_operand.hbm [shape: f32[1,128], index: 4, kind: input, shape index: {}]
  %s5 = inlined_call_operand.hbm [shape: bf16[128,256], index: 5, kind: input, shape index: {}]
  %s6 = inlined_call_operand.vmem [shape: f32[1,256], index: 6, kind: input, shape index: {}]
  %s7 = inlined_call_operand.hbm [shape: bf16[256,128], index: 7, kind: input, shape index: {}]
  %s8 = inlined_call_operand.vmem [shape: f32[1,128], index: 8, kind: input, shape index: {}]
  %s9 = inlined_call_operand.hbm [shape: f32[8,128], index: 9, kind: output, shape index: {}]
  %s10 = sld [smem:[#allocation0]]
  $region70: #{tpu_custom_call.1} parent=0
    _
  %s12 = ssub.s32 1, %s10
  %s13 = scalar_select 0, %s12, %s10
  $region1: #{tpu_custom_call.1} parent=0
    #allocation2 [shape = 'u8[2048]{0}', space=vmem, size = 0x800, scoped, tag = 'input window, operand 0, single buffered']
    #allocation3 [shape = 's32[1]{0}', space=sflag, size = 0x4, scoped, tag = 'scoped memory for tpu_custom_call.1']
    #allocation4 [shape = 's32[1]{0}', space=sflag, size = 0x4, scoped, tag = 'scoped memory for tpu_custom_call.1']
    #allocation5 [shape = 'u8[32768]{0}', space=vmem, size = 0x8000, scoped, tag = 'input window, operand 1, single buffered']
    #allocation6 [shape = 's32[1]{0}', space=sflag, size = 0x4, scoped, tag = 'scoped memory for tpu_custom_call.1']
    #allocation7 [shape = 'u8[32768]{0}', space=vmem, size = 0x8000, scoped, tag = 'input window, operand 3, single buffered']
    #allocation8 [shape = 'u8[512]{0}', space=vmem, size = 0x400, scoped, tag = 'input window, operand 4, single buffered']
    #allocation9 [shape = 's32[1]{0}', space=sflag, size = 0x4, scoped, tag = 'scoped memory for tpu_custom_call.1']
    #allocation10 [shape = 'u8[65536]{0}', space=vmem, size = 0x10000, scoped, tag = 'input window, operand 5, single buffered']
    #allocation11 [shape = 'u8[65536]{0}', space=vmem, size = 0x10000, scoped, tag = 'input window, operand 7, single buffered']
    #allocation12 [shape = 's32[1]{0}', space=sflag, size = 0x4, scoped, tag = 'scoped memory for tpu_custom_call.1']
    #allocation13 [shape = 'u8[4096]{0}', space=vmem, size = 0x1000, scoped, tag = 'output window, operand 0, single buffered']
    %14 = vsyncpa [#allocation3], 0
    %15 = vsyncpa [#allocation6], 0
    %16 = vsyncpa [#allocation9], 0
    %17 = vsyncpa [#allocation12], 0
    %18 = vsyncpa [#allocation4], 0
    // Predicated region
    $region2: #{tpu_custom_call.1} parent=1 // pred_check
      _
    $region3: #{tpu_custom_call.1} parent=1 // pred_check_branch
      %20 = sbr.rel (0) target = $region5
    $region4: #{tpu_custom_call.1} parent=1 // pred_region
      %22 = vsyncadd [#allocation3], 0
      %s24 = sshll.u32 %s0, 4
      %s25 = int_to_ptr.hbm [resolvable:$true] %s24
      %s26 = sshll.u32 [#allocation2], 4
      %s27 = int_to_ptr.vmem [resolvable:$true] %s26
      %29 = dma.hbm_to_vmem [thread:$0]  %s25, 64, %s27, [#allocation3]
    $region5: #{tpu_custom_call.1} parent=1 // pred_fallthru
      _
    // Predicated region
    $region6: #{tpu_custom_call.1} parent=1 // pred_check
      _
    $region7: #{tpu_custom_call.1} parent=1 // pred_check_branch
      %31 = sbr.rel (0) target = $region9
    $region8: #{tpu_custom_call.1} parent=1 // pred_region
      %33 = vsyncadd [#allocation6], 0
      %s34 = sshll.u32 %s1, 4
      %s35 = int_to_ptr.hbm [resolvable:$true] %s34
      %s36 = sshll.u32 [#allocation5], 4
      %s37 = int_to_ptr.vmem [resolvable:$true] %s36
      %42 = dma.hbm_to_vmem [thread:$0]  %s35, 1024, %s37, [#allocation6], 64, 64, 4
    $region9: #{tpu_custom_call.1} parent=1 // pred_fallthru
      _
    // Predicated region
    $region10: #{tpu_custom_call.1} parent=1 // pred_check
      _
    $region11: #{tpu_custom_call.1} parent=1 // pred_check_branch
      %44 = sbr.rel (0) target = $region13
    $region12: #{tpu_custom_call.1} parent=1 // pred_region
      _
    $region13: #{tpu_custom_call.1} parent=1 // pred_fallthru
      _
    // Predicated region
    $region14: #{tpu_custom_call.1} parent=1 // pred_check
      _
    $region15: #{tpu_custom_call.1} parent=1 // pred_check_branch
      %46 = sbr.rel (0) target = $region17
    $region16: #{tpu_custom_call.1} parent=1 // pred_region
      %48 = vsyncadd [#allocation6], 0
      %s49 = sshll.u32 %s3, 4
      %s50 = int_to_ptr.hbm [resolvable:$true] %s49
      %s51 = sshll.u32 [#allocation7], 4
      %s52 = int_to_ptr.vmem [resolvable:$true] %s51
      %57 = dma.hbm_to_vmem [thread:$0]  %s50, 1024, %s52, [#allocation6], 64, 64, 4
    $region17: #{tpu_custom_call.1} parent=1 // pred_fallthru
      _
    // Predicated region
    $region18: #{tpu_custom_call.1} parent=1 // pred_check
      _
    $region19: #{tpu_custom_call.1} parent=1 // pred_check_branch
      %59 = sbr.rel (0) target = $region21
    $region20: #{tpu_custom_call.1} parent=1 // pred_region
      %61 = vsyncadd [#allocation9], 0
      %s63 = sshll.u32 %s4, 4
      %s64 = int_to_ptr.hbm [resolvable:$true] %s63
      %s65 = sshll.u32 [#allocation8], 4
      %s66 = int_to_ptr.vmem [resolvable:$true] %s65
      %68 = dma.hbm_to_vmem [thread:$0]  %s64, 16, %s66, [#allocation9]
    $region21: #{tpu_custom_call.1} parent=1 // pred_fallthru
      _
    // Predicated region
    $region22: #{tpu_custom_call.1} parent=1 // pred_check
      _
    $region23: #{tpu_custom_call.1} parent=1 // pred_check_branch
      %70 = sbr.rel (0) target = $region25
    $region24: #{tpu_custom_call.1} parent=1 // pred_region
      %72 = vsyncadd [#allocation9], 0
      %s73 = sshll.u32 %s5, 4
      %s74 = int_to_ptr.hbm [resolvable:$true] %s73
      %s75 = sshll.u32 [#allocation10], 4
      %s76 = int_to_ptr.vmem [resolvable:$true] %s75
      %81 = dma.hbm_to_vmem [thread:$0]  %s74, 2048, %s76, [#allocation9], 128, 128, 8
    $region25: #{tpu_custom_call.1} parent=1 // pred_fallthru
      _
    // Predicated region
    $region26: #{tpu_custom_call.1} parent=1 // pred_check
      _
    $region27: #{tpu_custom_call.1} parent=1 // pred_check_branch
      %83 = sbr.rel (0) target = $region29
    $region28: #{tpu_custom_call.1} parent=1 // pred_region
      _
    $region29: #{tpu_custom_call.1} parent=1 // pred_fallthru
      _
    // Predicated region
    $region30: #{tpu_custom_call.1} parent=1 // pred_check
      _
    $region31: #{tpu_custom_call.1} parent=1 // pred_check_branch
      %85 = sbr.rel (0) target = $region33
    $region32: #{tpu_custom_call.1} parent=1 // pred_region
      %87 = vsyncadd [#allocation12], 0
      %s88 = sshll.u32 %s7, 4
      %s89 = int_to_ptr.hbm [resolvable:$true] %s88
      %s90 = sshll.u32 [#allocation11], 4
      %s91 = int_to_ptr.vmem [resolvable:$true] %s90
      %96 = dma.hbm_to_vmem [thread:$0]  %s89, 2048, %s91, [#allocation12], 64, 64, 4
    $region33: #{tpu_custom_call.1} parent=1 // pred_fallthru
      _
    // Predicated region
    $region34: #{tpu_custom_call.1} parent=1 // pred_check
      _
    $region35: #{tpu_custom_call.1} parent=1 // pred_check_branch
      %98 = sbr.rel (0) target = $region37
    $region36: #{tpu_custom_call.1} parent=1 // pred_region
      _
    $region37: #{tpu_custom_call.1} parent=1 // pred_fallthru
      _
    // Predicated region
    $region38: #{tpu_custom_call.1} parent=1 // pred_check
      _
    $region39: #{tpu_custom_call.1} parent=1 // pred_check_branch
      %100 = sbr.rel (0) target = $region41
    $region40: #{tpu_custom_call.1} parent=1 // pred_region
      %102 = dma.done [#allocation3], 64
    $region41: #{tpu_custom_call.1} parent=1 // pred_fallthru
      _
    // Predicated region
    $region42: #{tpu_custom_call.1} parent=1 // pred_check
      _
    $region43: #{tpu_custom_call.1} parent=1 // pred_check_branch
      %104 = sbr.rel (0) target = $region45
    $region44: #{tpu_custom_call.1} parent=1 // pred_region
      %106 = dma.done [#allocation6], 1024
    $region45: #{tpu_custom_call.1} parent=1 // pred_fallthru
      _
    // Predicated region
    $region46: #{tpu_custom_call.1} parent=1 // pred_check
      _
    $region47: #{tpu_custom_call.1} parent=1 // pred_check_branch
      %108 = sbr.rel (0) target = $region49
    $region48: #{tpu_custom_call.1} parent=1 // pred_region
      %110 = dma.done [#allocation6], 1024
    $region49: #{tpu_custom_call.1} parent=1 // pred_fallthru
      _
    // Predicated region
    $region50: #{tpu_custom_call.1} parent=1 // pred_check
      _
    $region51: #{tpu_custom_call.1} parent=1 // pred_check_branch
      %112 = sbr.rel (0) target = $region53
    $region52: #{tpu_custom_call.1} parent=1 // pred_region
      %114 = dma.done [#allocation9], 16
    $region53: #{tpu_custom_call.1} parent=1 // pred_fallthru
      _
    // Predicated region
    $region54: #{tpu_custom_call.1} parent=1 // pred_check
      _
    $region55: #{tpu_custom_call.1} parent=1 // pred_check_branch
      %116 = sbr.rel (0) target = $region57
    $region56: #{tpu_custom_call.1} parent=1 // pred_region
      %118 = dma.done [#allocation9], 2048
    $region57: #{tpu_custom_call.1} parent=1 // pred_fallthru
      _
    // Predicated region
    $region58: #{tpu_custom_call.1} parent=1 // pred_check
      _
    $region59: #{tpu_custom_call.1} parent=1 // pred_check_branch
      %120 = sbr.rel (0) target = $region61
    $region60: #{tpu_custom_call.1} parent=1 // pred_region
      %122 = dma.done [#allocation12], 2048
    $region61: #{tpu_custom_call.1} parent=1 // pred_fallthru
      _
    %v123 = vld [vmem:[#allocation2] sm:$0xf]
    %v124 = vld [vmem:[#allocation5] sm:$0xf]
    %v125 = vld [vmem:[#allocation5 + $0x4] sm:$0xf]
    %v126 = vld [vmem:[#allocation5 + $0x8] sm:$0xf]
    %v127 = vld [vmem:[#allocation5 + $0xc] sm:$0xf]
    %v128 = vld [vmem:[#allocation5 + $0x10] sm:$0xf]
    %v129 = vld [vmem:[#allocation5 + $0x14] sm:$0xf]
    %v130 = vld [vmem:[#allocation5 + $0x18] sm:$0xf]
    %v131 = vld [vmem:[#allocation5 + $0x1c] sm:$0xf]
    %v132 = vld [vmem:[#allocation5 + $0x20] sm:$0xf]
    %v133 = vld [vmem:[#allocation5 + $0x24] sm:$0xf]
    %v134 = vld [vmem:[#allocation5 + $0x28] sm:$0xf]
    %v135 = vld [vmem:[#allocation5 + $0x2c] sm:$0xf]
    %v136 = vld [vmem:[#allocation5 + $0x30] sm:$0xf]
    %v137 = vld [vmem:[#allocation5 + $0x34] sm:$0xf]
    %v138 = vld [vmem:[#allocation5 + $0x38] sm:$0xf]
    %v139 = vld [vmem:[#allocation5 + $0x3c] sm:$0xf]
    %v140 = vld [vmem:[%s2] sm:$0x1]
    %v142 = vperm.slane %v140, 0
    %v160 = vunpack.c.l.b16 %v124
    %v161 = vunpack.c.l.b16 %v125
    %v162 = vunpack.c.l.b16 %v126
    %v163 = vunpack.c.l.b16 %v127
    %v164 = vunpack.c.l.b16 %v128
    %v165 = vunpack.c.l.b16 %v129
    %v166 = vunpack.c.l.b16 %v130
    %v167 = vunpack.c.l.b16 %v131
    %v168 = vunpack.c.l.b16 %v132
    %v169 = vunpack.c.l.b16 %v133
    %v170 = vunpack.c.l.b16 %v134
    %v171 = vunpack.c.l.b16 %v135
    %v172 = vunpack.c.l.b16 %v136
    %v173 = vunpack.c.l.b16 %v137
    %v174 = vunpack.c.l.b16 %v138
    %v175 = vunpack.c.l.b16 %v139
    %v176 = vpack.c.b16 %v161, %v160
    %v177 = vpack.c.b16 %v163, %v162
    %v178 = vpack.c.b16 %v165, %v164
    %v179 = vpack.c.b16 %v167, %v166
    %v180 = vpack.c.b16 %v169, %v168
    %v181 = vpack.c.b16 %v171, %v170
    %v182 = vpack.c.b16 %v173, %v172
    %v183 = vpack.c.b16 %v175, %v174
    %192 = vmatpush.bf16.msra.mxu0 %v183
    %193 = vmatpush.bf16.msra.mxu0 %v182
    %194 = vmatpush.bf16.msra.mxu0 %v181
    %195 = vmatpush.bf16.msra.mxu0 %v180
    %196 = vmatpush.bf16.msra.mxu0 %v179
    %197 = vmatpush.bf16.msra.mxu0 %v178
    %198 = vmatpush.bf16.msra.mxu0 %v177
    %199 = vmatpush.bf16.msra.mxu0 %v176
    %200 = vmatmul.bf16.gmra.mxu0 %v123
    %v201 = vpop.f32.mrf.mxu0
    %v202 = vadd.f32 %v142, %v201
    %v203 = vpop.f32.mrf.mxu0
    %204 = vdwg.mxu0
    %v205 = vmax.f32 %v202, 0.0
    %v206 = vpack.c.bf16 %v205, %v205
    %v207 = vld [vmem:[#allocation7] sm:$0xf]
    %v208 = vld [vmem:[#allocation7 + $0x4] sm:$0xf]
    %v209 = vld [vmem:[#allocation7 + $0x8] sm:$0xf]
    %v210 = vld [vmem:[#allocation7 + $0xc] sm:$0xf]
    %v211 = vld [vmem:[#allocation7 + $0x10] sm:$0xf]
    %v212 = vld [vmem:[#allocation7 + $0x14] sm:$0xf]
    %v213 = vld [vmem:[#allocation7 + $0x18] sm:$0xf]
    %v214 = vld [vmem:[#allocation7 + $0x1c] sm:$0xf]
    %v215 = vld [vmem:[#allocation7 + $0x20] sm:$0xf]
    %v216 = vld [vmem:[#allocation7 + $0x24] sm:$0xf]
    %v217 = vld [vmem:[#allocation7 + $0x28] sm:$0xf]
    %v218 = vld [vmem:[#allocation7 + $0x2c] sm:$0xf]
    %v219 = vld [vmem:[#allocation7 + $0x30] sm:$0xf]
    %v220 = vld [vmem:[#allocation7 + $0x34] sm:$0xf]
    %v221 = vld [vmem:[#allocation7 + $0x38] sm:$0xf]
    %v222 = vld [vmem:[#allocation7 + $0x3c] sm:$0xf]
    %v223 = vld [vmem:[#allocation8] sm:$0x1]
    %v225 = vperm.slane %v223, 0
    %v243 = vunpack.c.l.b16 %v207
    %v244 = vunpack.c.l.b16 %v208
    %v245 = vunpack.c.l.b16 %v209
    %v246 = vunpack.c.l.b16 %v210
    %v247 = vunpack.c.l.b16 %v211
    %v248 = vunpack.c.l.b16 %v212
    %v249 = vunpack.c.l.b16 %v213
    %v250 = vunpack.c.l.b16 %v214
    %v251 = vunpack.c.l.b16 %v215
    %v252 = vunpack.c.l.b16 %v216
    %v253 = vunpack.c.l.b16 %v217
    %v254 = vunpack.c.l.b16 %v218
    %v255 = vunpack.c.l.b16 %v219
    %v256 = vunpack.c.l.b16 %v220
    %v257 = vunpack.c.l.b16 %v221
    %v258 = vunpack.c.l.b16 %v222
    %v259 = vpack.c.b16 %v244, %v243
    %v260 = vpack.c.b16 %v246, %v245
    %v261 = vpack.c.b16 %v248, %v247
    %v262 = vpack.c.b16 %v250, %v249
    %v263 = vpack.c.b16 %v252, %v251
    %v264 = vpack.c.b16 %v254, %v253
    %v265 = vpack.c.b16 %v256, %v255
    %v266 = vpack.c.b16 %v258, %v257
    %275 = vmatpush.bf16.msra.mxu0 %v266
    %276 = vmatpush.bf16.msra.mxu0 %v265
    %277 = vmatpush.bf16.msra.mxu0 %v264
    %278 = vmatpush.bf16.msra.mxu0 %v263
    %279 = vmatpush.bf16.msra.mxu0 %v262
    %280 = vmatpush.bf16.msra.mxu0 %v261
    %281 = vmatpush.bf16.msra.mxu0 %v260
    %282 = vmatpush.bf16.msra.mxu0 %v259
    %283 = vmatmul.bf16.gmra.mxu0 %v206
    %v284 = vpop.f32.mrf.mxu0
    %v285 = vadd.f32 %v225, %v284
    %v286 = vpop.f32.mrf.mxu0
    %287 = vdwg.mxu0
    %v288 = vmax.f32 %v285, 0.0
    %v289 = vpack.c.bf16 %v288, %v288
    %v290 = vld [vmem:[#allocation10] sm:$0xff]
    %v291 = vld [vmem:[#allocation10 + $0x8] sm:$0xff]
    %v292 = vld [vmem:[#allocation10 + $0x10] sm:$0xff]
    %v293 = vld [vmem:[#allocation10 + $0x18] sm:$0xff]
    %v294 = vld [vmem:[#allocation10 + $0x20] sm:$0xff]
    %v295 = vld [vmem:[#allocation10 + $0x28] sm:$0xff]
    %v296 = vld [vmem:[#allocation10 + $0x30] sm:$0xff]
    %v297 = vld [vmem:[#allocation10 + $0x38] sm:$0xff]
    %v298 = vld [vmem:[#allocation10 + $0x40] sm:$0xff]
    %v299 = vld [vmem:[#allocation10 + $0x48] sm:$0xff]
    %v300 = vld [vmem:[#allocation10 + $0x50] sm:$0xff]
    %v301 = vld [vmem:[#allocation10 + $0x58] sm:$0xff]
    %v302 = vld [vmem:[#allocation10 + $0x60] sm:$0xff]
    %v303 = vld [vmem:[#allocation10 + $0x68] sm:$0xff]
    %v304 = vld [vmem:[#allocation10 + $0x70] sm:$0xff]
    %v305 = vld [vmem:[#allocation10 + $0x78] sm:$0xff]
    %v306 = vld [vmem:[%s6] sm:$0x3]
    %v308 = vperm.slane %v306, 0
    %v309 = vperm.slane %v306, 1
    %v328 = vunpack.c.l.b16 %v290
    %v329 = vunpack.c.h.b16 %v290
    %v330 = vunpack.c.l.b16 %v291
    %v331 = vunpack.c.h.b16 %v291
    %v332 = vunpack.c.l.b16 %v292
    %v333 = vunpack.c.h.b16 %v292
    %v334 = vunpack.c.l.b16 %v293
    %v335 = vunpack.c.h.b16 %v293
    %v336 = vunpack.c.l.b16 %v294
    %v337 = vunpack.c.h.b16 %v294
    %v338 = vunpack.c.l.b16 %v295
    %v339 = vunpack.c.h.b16 %v295
    %v340 = vunpack.c.l.b16 %v296
    %v341 = vunpack.c.h.b16 %v296
    %v342 = vunpack.c.l.b16 %v297
    %v343 = vunpack.c.h.b16 %v297
    %v344 = vunpack.c.l.b16 %v298
    %v345 = vunpack.c.h.b16 %v298
    %v346 = vunpack.c.l.b16 %v299
    %v347 = vunpack.c.h.b16 %v299
    %v348 = vunpack.c.l.b16 %v300
    %v349 = vunpack.c.h.b16 %v300
    %v350 = vunpack.c.l.b16 %v301
    %v351 = vunpack.c.h.b16 %v301
    %v352 = vunpack.c.l.b16 %v302
    %v353 = vunpack.c.h.b16 %v302
    %v354 = vunpack.c.l.b16 %v303
    %v355 = vunpack.c.h.b16 %v303
    %v356 = vunpack.c.l.b16 %v304
    %v357 = vunpack.c.h.b16 %v304
    %v358 = vunpack.c.l.b16 %v305
    %v359 = vunpack.c.h.b16 %v305
    %v360 = vpack.c.b16 %v330, %v328
    %v361 = vpack.c.b16 %v331, %v329
    %v362 = vpack.c.b16 %v334, %v332
    %v363 = vpack.c.b16 %v335, %v333
    %v364 = vpack.c.b16 %v338, %v336
    %v365 = vpack.c.b16 %v339, %v337
    %v366 = vpack.c.b16 %v342, %v340
    %v367 = vpack.c.b16 %v343, %v341
    %v368 = vpack.c.b16 %v346, %v344
    %v369 = vpack.c.b16 %v347, %v345
    %v370 = vpack.c.b16 %v350, %v348
    %v371 = vpack.c.b16 %v351, %v349
    %v372 = vpack.c.b16 %v354, %v352
    %v373 = vpack.c.b16 %v355, %v353
    %v374 = vpack.c.b16 %v358, %v356
    %v375 = vpack.c.b16 %v359, %v357
    %392 = vmatpush.bf16.msra.mxu0 %v374
    %393 = vmatpush.bf16.msra.mxu0 %v372
    %394 = vmatpush.bf16.msra.mxu0 %v370
    %395 = vmatpush.bf16.msra.mxu0 %v368
    %396 = vmatpush.bf16.msra.mxu0 %v366
    %397 = vmatpush.bf16.msra.mxu0 %v364
    %398 = vmatpush.bf16.msra.mxu0 %v362
    %399 = vmatpush.bf16.msra.mxu0 %v360
    %400 = vmatmul.bf16.gmra.mxu0 %v289
    %v401 = vpop.f32.mrf.mxu0
    %v402 = vadd.f32 %v308, %v401
    %v403 = vpop.f32.mrf.mxu0
    %404 = vdwg.mxu0
    %405 = vmatpush.bf16.msra.mxu0 %v375
    %406 = vmatpush.bf16.msra.mxu0 %v373
    %407 = vmatpush.bf16.msra.mxu0 %v371
    %408 = vmatpush.bf16.msra.mxu0 %v369
    %409 = vmatpush.bf16.msra.mxu0 %v367
    %410 = vmatpush.bf16.msra.mxu0 %v365
    %411 = vmatpush.bf16.msra.mxu0 %v363
    %412 = vmatpush.bf16.msra.mxu0 %v361
    %413 = vmatmul.bf16.gmra.mxu0 %v289
    %v414 = vpop.f32.mrf.mxu0
    %v415 = vadd.f32 %v309, %v414
    %v416 = vpop.f32.mrf.mxu0
    %417 = vdwg.mxu0
    %v418 = vmax.f32 %v402, 0.0
    %v419 = vmax.f32 %v415, 0.0
    %v420 = vpack.c.bf16 %v418, %v418
    %v421 = vpack.c.bf16 %v419, %v419
    %v422 = vld [vmem:[#allocation11] sm:$0xf]
    %v423 = vld [vmem:[#allocation11 + $0x4] sm:$0xf]
    %v424 = vld [vmem:[#allocation11 + $0x8] sm:$0xf]
    %v425 = vld [vmem:[#allocation11 + $0xc] sm:$0xf]
    %v426 = vld [vmem:[#allocation11 + $0x10] sm:$0xf]
    %v427 = vld [vmem:[#allocation11 + $0x14] sm:$0xf]
    %v428 = vld [vmem:[#allocation11 + $0x18] sm:$0xf]
    %v429 = vld [vmem:[#allocation11 + $0x1c] sm:$0xf]
    %v430 = vld [vmem:[#allocation11 + $0x20] sm:$0xf]
    %v431 = vld [vmem:[#allocation11 + $0x24] sm:$0xf]
    %v432 = vld [vmem:[#allocation11 + $0x28] sm:$0xf]
    %v433 = vld [vmem:[#allocation11 + $0x2c] sm:$0xf]
    %v434 = vld [vmem:[#allocation11 + $0x30] sm:$0xf]
    %v435 = vld [vmem:[#allocation11 + $0x34] sm:$0xf]
    %v436 = vld [vmem:[#allocation11 + $0x38] sm:$0xf]
    %v437 = vld [vmem:[#allocation11 + $0x3c] sm:$0xf]
    %v438 = vld [vmem:[#allocation11 + $0x40] sm:$0xf]
    %v439 = vld [vmem:[#allocation11 + $0x44] sm:$0xf]
    %v440 = vld [vmem:[#allocation11 + $0x48] sm:$0xf]
    %v441 = vld [vmem:[#allocation11 + $0x4c] sm:$0xf]
    %v442 = vld [vmem:[#allocation11 + $0x50] sm:$0xf]
    %v443 = vld [vmem:[#allocation11 + $0x54] sm:$0xf]
    %v444 = vld [vmem:[#allocation11 + $0x58] sm:$0xf]
    %v445 = vld [vmem:[#allocation11 + $0x5c] sm:$0xf]
    %v446 = vld [vmem:[#allocation11 + $0x60] sm:$0xf]
    %v447 = vld [vmem:[#allocation11 + $0x64] sm:$0xf]
    %v448 = vld [vmem:[#allocation11 + $0x68] sm:$0xf]
    %v449 = vld [vmem:[#allocation11 + $0x6c] sm:$0xf]
    %v450 = vld [vmem:[#allocation11 + $0x70] sm:$0xf]
    %v451 = vld [vmem:[#allocation11 + $0x74] sm:$0xf]
    %v452 = vld [vmem:[#allocation11 + $0x78] sm:$0xf]
    %v453 = vld [vmem:[#allocation11 + $0x7c] sm:$0xf]
    %v454 = vld [vmem:[%s8] sm:$0x1]
    %v456 = vperm.slane %v454, 0
    %v490 = vunpack.c.l.b16 %v422
    %v491 = vunpack.c.l.b16 %v423
    %v492 = vunpack.c.l.b16 %v424
    %v493 = vunpack.c.l.b16 %v425
    %v494 = vunpack.c.l.b16 %v426
    %v495 = vunpack.c.l.b16 %v427
    %v496 = vunpack.c.l.b16 %v428
    %v497 = vunpack.c.l.b16 %v429
    %v498 = vunpack.c.l.b16 %v430
    %v499 = vunpack.c.l.b16 %v431
    %v500 = vunpack.c.l.b16 %v432
    %v501 = vunpack.c.l.b16 %v433
    %v502 = vunpack.c.l.b16 %v434
    %v503 = vunpack.c.l.b16 %v435
    %v504 = vunpack.c.l.b16 %v436
    %v505 = vunpack.c.l.b16 %v437
    %v506 = vunpack.c.l.b16 %v438
    %v507 = vunpack.c.l.b16 %v439
    %v508 = vunpack.c.l.b16 %v440
    %v509 = vunpack.c.l.b16 %v441
    %v510 = vunpack.c.l.b16 %v442
    %v511 = vunpack.c.l.b16 %v443
    %v512 = vunpack.c.l.b16 %v444
    %v513 = vunpack.c.l.b16 %v445
    %v514 = vunpack.c.l.b16 %v446
    %v515 = vunpack.c.l.b16 %v447
    %v516 = vunpack.c.l.b16 %v448
    %v517 = vunpack.c.l.b16 %v449
    %v518 = vunpack.c.l.b16 %v450
    %v519 = vunpack.c.l.b16 %v451
    %v520 = vunpack.c.l.b16 %v452
    %v521 = vunpack.c.l.b16 %v453
    %v522 = vpack.c.b16 %v491, %v490
    %v523 = vpack.c.b16 %v493, %v492
    %v524 = vpack.c.b16 %v495, %v494
    %v525 = vpack.c.b16 %v497, %v496
    %v526 = vpack.c.b16 %v499, %v498
    %v527 = vpack.c.b16 %v501, %v500
    %v528 = vpack.c.b16 %v503, %v502
    %v529 = vpack.c.b16 %v505, %v504
    %v530 = vpack.c.b16 %v507, %v506
    %v531 = vpack.c.b16 %v509, %v508
    %v532 = vpack.c.b16 %v511, %v510
    %v533 = vpack.c.b16 %v513, %v512
    %v534 = vpack.c.b16 %v515, %v514
    %v535 = vpack.c.b16 %v517, %v516
    %v536 = vpack.c.b16 %v519, %v518
    %v537 = vpack.c.b16 %v521, %v520
    %554 = vmatpush.bf16.msra.mxu0 %v529
    %555 = vmatpush.bf16.msra.mxu0 %v528
    %556 = vmatpush.bf16.msra.mxu0 %v527
    %557 = vmatpush.bf16.msra.mxu0 %v526
    %558 = vmatpush.bf16.msra.mxu0 %v525
    %559 = vmatpush.bf16.msra.mxu0 %v524
    %560 = vmatpush.bf16.msra.mxu0 %v523
    %561 = vmatpush.bf16.msra.mxu0 %v522
    %562 = vmatmul.bf16.gmra.mxu0 %v420
    %v563 = vpop.f32.mrf.mxu0
    %v564 = vadd.f32 %v456, %v563
    %v565 = vpop.f32.mrf.mxu0
    %566 = vdwg.mxu0
    %567 = vmatpush.bf16.msra.mxu0 %v537
    %568 = vmatpush.bf16.msra.mxu0 %v536
    %569 = vmatpush.bf16.msra.mxu0 %v535
    %570 = vmatpush.bf16.msra.mxu0 %v534
    %571 = vmatpush.bf16.msra.mxu0 %v533
    %572 = vmatpush.bf16.msra.mxu0 %v532
    %573 = vmatpush.bf16.msra.mxu0 %v531
    %574 = vmatpush.bf16.msra.mxu0 %v530
    %575 = vmatmul.bf16.gmra.mxu0 %v421
    %v576 = vpop.f32.mrf.mxu0
    %v577 = vadd.f32 %v564, %v576
    %v578 = vpop.f32.mrf.mxu0
    %579 = vdwg.mxu0
    %v580 = vlaneseq
    %v581 = vand.u32 %v580, 127
    %vm582 = vcmp.lt.s32.totalorder %v581, 8
    %v583 = vsel %vm582, %v577, -1e+30
    %584 = vmax.xlane.f32.xlu0 %v583
    %v585 = vpop.xlane.xlu0 %584
    %v586 = vsub.f32 %v583, %v585
    %v587 = vmul.f32 %v586, 1.442695
    %v588 = vpow.pop %v587
    %589 = vadd.xlane.f32.xlu0 %v588
    %v590 = vpop.xlane.xlu0 %589
    %v591 = vrcp.pop %v590
    %v592 = vmul.f32 %v590, %v591
    %v593 = vsub.f32 2.0, %v592
    %v594 = vmul.f32 %v591, %v593
    %v595 = vmul.f32 %v588, %v594
    %v596 = vsel %vm582, %v595, %v577
    %597 = vst [vmem:[#allocation13] sm:$0xff] %v596
    // Predicated region
    $region62: #{tpu_custom_call.1} parent=1 // pred_check
      _
    $region63: #{tpu_custom_call.1} parent=1 // pred_check_branch
      %599 = sbr.rel (0) target = $region65
    $region64: #{tpu_custom_call.1} parent=1 // pred_region
      %601 = vsyncadd [#allocation4], 0
      %s603 = sshll.u32 [#allocation13], 4
      %s604 = int_to_ptr.vmem [resolvable:$true] %s603
      %s605 = sshll.u32 %s9, 4
      %s606 = int_to_ptr.hbm [resolvable:$true] %s605
      %608 = dma.vmem_to_hbm [thread:$0]  %s604, 128, %s606, [#allocation4]
    $region65: #{tpu_custom_call.1} parent=1 // pred_fallthru
      _
    // Predicated region
    $region66: #{tpu_custom_call.1} parent=1 // pred_check
      _
    $region67: #{tpu_custom_call.1} parent=1 // pred_check_branch
      %610 = sbr.rel (0) target = $region69
    $region68: #{tpu_custom_call.1} parent=1 // pred_region
      %612 = dma.done [#allocation4], 128
    $region69: #{tpu_custom_call.1} parent=1 // pred_fallthru
      _
    %613 = vsyncpa [#allocation3], 1
    %614 = vsyncpa [#allocation6], 1
    %615 = vsyncpa [#allocation9], 1
    %616 = vsyncpa [#allocation12], 1
    %617 = vsyncpa [#allocation4], 1

</llo_original>
